<compile_context>
chip_gen: v7x
topology: tpu7x:2x2x1
jax: 0.10.0
libtpu: 0.0.40
codegen_flags: <defaults>
</compile_context>

<pallas_src>
import jax
import jax.numpy as jnp
from jax.experimental import pallas as pl
from jax.experimental.pallas import tpu as pltpu


_PAD_SENTINEL = 1e30  # -qc of padded context columns -> logits == -1e30 -> exp == 0


def _round_up(n, m):
    return ((n + m - 1) // m) * m


def _full_spec(shape):
    """BlockSpec covering the whole array regardless of grid arity."""
    nd = len(shape)
    return pl.BlockSpec(shape, lambda *args, _nd=nd: (0,) * _nd)


def _pick_parallel_tile(n, requested, *, min_tile):
    """Tile for a 'parallel' grid axis: as large as requested, but keep >=2 blocks
    when n is big enough (v7x megacore: a single block idles one TensorCore)."""
    t = min(_round_up(requested, 8), _round_up(max(n, 1), 8))
    if _round_up(n, t) // t < 2 and n >= 2 * min_tile:
        t = max(min_tile, _round_up((n + 1) // 2, 8))
    return t


# ---------------------------------------------------------------------------
# Kernel 1: FeatureExtractor  (Linear -> ReLU -> Linear -> ReLU -> Linear)
# ---------------------------------------------------------------------------
def _fe_kernel(x_ref, w1_ref, b1_ref, w2_ref, b2_ref, w3_ref, b3_ref, out_ref):
    x = x_ref[...]                                                     # (TR, x_dim)
    h1 = jnp.dot(x, w1_ref[...], preferred_element_type=jnp.float32) + b1_ref[...]
    h1 = jnp.maximum(h1, 0.0)                                          # (TR, h)
    h2 = jnp.dot(h1, w2_ref[...], preferred_element_type=jnp.float32) + b2_ref[...]
    h2 = jnp.maximum(h2, 0.0)                                          # (TR, h//2)
    out = jnp.dot(h2, w3_ref[...], preferred_element_type=jnp.float32) + b3_ref[...]
    out_ref[...] = out.astype(out_ref.dtype)                           # (TR, z_dim)


def feature_extractor(x, params, *, row_tile=4096):
    w1, b1, w2, b2, w3, b3 = (params["w1"], params["b1"], params["w2"],
                              params["b2"], params["w3"], params["b3"])
    n, x_dim = x.shape
    h1d, h2d, z_dim = w1.shape[1], w2.shape[1], w3.shape[1]

    tr = _pick_parallel_tile(n, row_tile, min_tile=1024)
    n_pad = _round_up(n, tr)

    # skip redundant copies for the mem-bound kernel
    x_p = x if x.dtype == jnp.float32 else x.astype(jnp.float32)
    if n_pad != n:
        x_p = jnp.pad(x_p, ((0, n_pad - n), (0, 0)))

    flops = 2 * n_pad * (x_dim * h1d + h1d * h2d + h2d * z_dim)
    bytes_accessed = 4 * (n_pad * x_dim + x_dim * h1d + h1d + h1d * h2d + h2d
                          + h2d * z_dim + z_dim + n_pad * z_dim)

    out = pl.pallas_call(
        _fe_kernel,
        out_shape=jax.ShapeDtypeStruct((n_pad, z_dim), jnp.float32),
        grid=(n_pad // tr,),
        in_specs=[pl.BlockSpec((tr, x_dim), lambda i: (i, 0)),
                  _full_spec(w1.shape), _full_spec(b1.shape),
                  _full_spec(w2.shape), _full_spec(b2.shape),
                  _full_spec(w3.shape), _full_spec(b3.shape)],
        out_specs=pl.BlockSpec((tr, z_dim), lambda i: (i, 0)),
        compiler_params=pltpu.CompilerParams(
            dimension_semantics=("parallel",),
            vmem_limit_bytes=64 * 1024 * 1024),
        cost_estimate=pl.CostEstimate(flops=flops, transcendentals=0,
                                      bytes_accessed=bytes_accessed),
    )(x_p, w1, b1, w2, b2, w3, b3)
    return out[:n] if n_pad != n else out


# ---------------------------------------------------------------------------
# Kernel 2: Interpolator (exponential-kernel weighted mean, tiled + online)
#
#   (a-b)^T W (a-b) = a^T W a + b^T W b - a^T (W + W^T) b
#   logits = -s  from ONE matmul:  [zt@(W+W^T) | -qt | 1] @ [[zc^T]; [1]; [-qc]]
#   thetas = exp(logits);  out = thetas @ y / sum(thetas)
# ---------------------------------------------------------------------------
def _interp_kernel(zta_ref, zca_ref, yc_ref, out_ref, acc_ref, m_ref):
    kc = pl.program_id(1)

    @pl.when(kc == 0)
    def _():
        acc_ref[...] = jnp.zeros_like(acc_ref)
        m_ref[...] = jnp.full_like(m_ref, -jnp.inf)

    # single f32 MXU matmul directly yields logits (qt/qc folded into K)
    logits = jnp.dot(zta_ref[...], zca_ref[...],
                     preferred_element_type=jnp.float32)               # (TNt, TNc)

    # online (flash-style) max for overflow safety; cancels exactly in num/denom
    m_prev = m_ref[...]                                                # (TNt, 1)
    m_new = jnp.maximum(m_prev, jnp.max(logits, axis=-1, keepdims=True))
    p = jnp.exp(logits - m_new)                                        # f32, EUP
    scale = jnp.exp(m_prev - m_new)                                    # (TNt, 1)

    # dominant matmul: bf16 operands (p cast, yc pre-cast), f32 accumulation.
    # One lane-dense matmul gives numerator (cols :Y) and denominator (col Y).
    acc_ref[...] = scale * acc_ref[...] + jnp.dot(
        p.astype(yc_ref.dtype), yc_ref[...], preferred_element_type=jnp.float32)
    m_ref[...] = m_new

    @pl.when(kc == pl.num_programs(1) - 1)
    def _():
        out_ref[...] = acc_ref[...].astype(out_ref.dtype)


def interpolate(z_context, y_context, z_target, W, *, tile_t=2048, tile_c=512):
    nt, d = z_target.shape
    nc, y_dim = y_context.shape

    z_context = z_context.astype(jnp.float32)
    z_target = z_target.astype(jnp.float32)
    W = W.astype(jnp.float32)

    # ---- hoisted per-row work (O(N*D^2), tiny) -----------------------------
    w_sym = W + W.T
    ztws = z_target @ w_sym                                            # (Nt, D)
    qt = 0.5 * jnp.sum(ztws * z_target, axis=-1, keepdims=True)        # (Nt, 1)
    zta = jnp.concatenate(                                             # (Nt, D+2)
        [ztws, -qt, jnp.ones((nt, 1), jnp.float32)], axis=-1)
    qc = 0.5 * jnp.sum((z_context @ w_sym) * z_context, axis=-1)       # (Nc,)

    # augmented values [y | 1 | 0...]: one matmul -> numerator + denominator
    yc_aug = jnp.concatenate(
        [y_context.astype(jnp.float32), jnp.ones((nc, 1), jnp.float32)], axis=-1)

    # ---- padding / tile sizing ---------------------------------------------
    d_aug = d + 2
    y_pad = _round_up(y_dim + 1, 128)                 # lane-dense output slab
    tt = _pick_parallel_tile(nt, tile_t, min_tile=512)
    tc = min(tile_c, _round_up(nc, 128))              # multiple of 128
    nt_pad = _round_up(nt, tt)
    nc_pad = _round_up(nc, tc)

    zta_p = jnp.pad(zta, ((0, nt_pad - nt), (0, 0)))                   # (Ntp, D+2)
    zcT_p = jnp.pad(z_context.T, ((0, 0), (0, nc_pad - nc)))           # (D, Ncp)
    ones_p = jnp.pad(jnp.ones((1, nc), jnp.float32),
                     ((0, 0), (0, nc_pad - nc)))                       # pads -> 0
    negqc_p = jnp.pad(-qc[None, :], ((0, 0), (0, nc_pad - nc)),
                      constant_values=-_PAD_SENTINEL)                  # mask pads
    zca_p = jnp.concatenate([zcT_p, ones_p, negqc_p], axis=0)          # (D+2, Ncp)
    # zero [y|1] rows for padded context are kept as a second masking mechanism
    yc_p = jnp.pad(yc_aug, ((0, nc_pad - nc),
                            (0, y_pad - (y_dim + 1)))).astype(jnp.bfloat16)

    kt_passes = nt_pad // tt
    flops = 2 * nt_pad * nc_pad * (d_aug + y_pad)
    bytes_accessed = (4 * nt_pad * d_aug                       # zta read once
                      + kt_passes * (4 * d_aug * nc_pad        # zca per kt pass
                                     + 2 * nc_pad * y_pad)     # yc (bf16) per pass
                      + 4 * nt_pad * y_pad)                    # output slab

    slab = pl.pallas_call(
        _interp_kernel,
        out_shape=jax.ShapeDtypeStruct((nt_pad, y_pad), jnp.float32),
        grid=(nt_pad // tt, nc_pad // tc),
        in_specs=[
            pl.BlockSpec((tt, d_aug), lambda kt, kc: (kt, 0)),   # [ztW | -qt | 1]
            pl.BlockSpec((d_aug, tc), lambda kt, kc: (0, kc)),   # [zc^T; 1; -qc]
            pl.BlockSpec((tc, y_pad), lambda kt, kc: (kc, 0)),   # [y | 1] bf16
        ],
        out_specs=pl.BlockSpec((tt, y_pad), lambda kt, kc: (kt, 0)),
        scratch_shapes=[pltpu.VMEM((tt, y_pad), jnp.float32),    # num/denom acc
                        pltpu.VMEM((tt, 1), jnp.float32)],       # running max
        compiler_params=pltpu.CompilerParams(
            dimension_semantics=("parallel", "arbitrary"),
            vmem_limit_bytes=64 * 1024 * 1024),
        cost_estimate=pl.CostEstimate(flops=flops,
                                      transcendentals=nt_pad * nc_pad,
                                      bytes_accessed=bytes_accessed),
    )(zta_p, zca_p, yc_p)

    num = slab[:nt, :y_dim]
    denom = slab[:nt, y_dim:y_dim + 1]
    return num / denom


# ---------------------------------------------------------------------------
# MeanInterpolator.forward
# ---------------------------------------------------------------------------
def mean_interpolator_forward(x_context, y_context, x_target, params,
                              scaling="normal"):
    _, num_context, _ = x_context.shape
    if scaling is not None:
        enc_in = jnp.concatenate([x_context, x_target], axis=-2)[0]   # (Nc+Nt, x_dim)
        proj = feature_extractor(enc_in, params)                      # (Nc+Nt, z_dim)
        if scaling == "uniform":
            proj = proj - proj.min(axis=-2)
            z_full = proj / proj.max(axis=-2)
        elif scaling == "normal":
            z_full = (proj - proj.mean()) / jnp.std(proj, ddof=1)     # torch .std() unbiased
        else:
            z_full = proj
        z_context = z_full[:num_context]
        z_target = z_full[num_context:]
    else:
        z_context, z_target = x_context[0], x_target[0]
    return interpolate(z_context, y_context[0], z_target, params["W_interp"])


# ---------------------------------------------------------------------------
# Pure-JAX references (mirror the PyTorch code directly) for validation
# ---------------------------------------------------------------------------
def _fe_reference(x, p):
    h1 = jnp.maximum(x @ p["w1"] + p["b1"][0], 0.0)
    h2 = jnp.maximum(h1 @ p["w2"] + p["b2"][0], 0.0)
    return h2 @ p["w3"] + p["b3"][0]


def _interp_reference(z_context, y_context, z_target, W):
    z_diff = z_target[:, None, :] - z_context[None, :, :]             # (Nt, Nc, D)
    thetas = jnp.exp(-jnp.sum((z_diff @ W) * z_diff, axis=-1))
    return thetas @ y_context / thetas.sum(axis=-1, keepdims=True)


def _reference_forward(x_context, y_context, x_target, params, scaling="normal"):
    _, num_context, _ = x_context.shape
    p = params
    if scaling is not None:
        x = jnp.concatenate([x_context, x_target], axis=-2)[0]
        proj = _fe_reference(x, p)
        if scaling == "uniform":
            proj = proj - proj.min(axis=-2)
            z_full = proj / proj.max(axis=-2)
        elif scaling == "normal":
            z_full = (proj - proj.mean()) / jnp.std(proj, ddof=1)
        else:
            z_full = proj
        z_context, z_target = z_full[:num_context], z_full[num_context:]
    else:
        z_context, z_target = x_context[0], x_target[0]
    return _interp_reference(z_context, y_context[0], z_target, p["W_interp"])


# ---------------------------------------------------------------------------
if __name__ == "__main__":
    # Shapes consistent with the module's forward:
    #   x_context (1, Nc, x_dim), y_context (1, Nc, y_dim), x_target (1, Nt, x_dim)
    x_dim, h_dim, z_dim, y_dim = 8, 32, 8, 4
    num_context, num_target = 16, 8
    scaling = "normal"

    key = jax.random.PRNGKey(0)
    keys = jax.random.split(key, 16)

    # FeatureExtractor linears stored (in, out), i.e. pre-transposed vs torch (out, in).
    params = {
        "w1": 0.1 * jax.random.normal(keys[0], (x_dim, h_dim), jnp.float32),
        "b1": 0.1 * jax.random.normal(keys[1], (1, h_dim), jnp.float32),
        "w2": 0.1 * jax.random.normal(keys[2], (h_dim, h_dim // 2), jnp.float32),
        "b2": 0.1 * jax.random.normal(keys[3], (1, h_dim // 2), jnp.float32),
        "w3": 0.1 * jax.random.normal(keys[4], (h_dim // 2, z_dim), jnp.float32),
        "b3": 0.1 * jax.random.normal(keys[5], (1, z_dim), jnp.float32),
        "W_interp": jnp.eye(z_dim, dtype=jnp.float32),  # torch.eye init in Interpolator
    }

    x_context = jax.random.normal(keys[6], (1, num_context, x_dim), jnp.float32)
    y_context = jax.random.normal(keys[7], (1, num_context, y_dim), jnp.float32)
    x_target = jax.random.normal(keys[8], (1, num_target, x_dim), jnp.float32)

    # --- full forward (tolerance loosened slightly for the bf16 p @ [y|1] matmul) ---
    out = mean_interpolator_forward(x_context, y_context, x_target, params, scaling)
    out = jax.block_until_ready(out)
    ref = _reference_forward(x_context, y_context, x_target, params, scaling)
    assert out.shape == (num_target, y_dim), out.shape
    assert jnp.allclose(out, ref, rtol=2e-2, atol=2e-2), (out, ref)

    # --- FeatureExtractor multi-row-tile path (grid > 1) ----------------------------
    enc_in = jnp.concatenate([x_context, x_target], axis=-2)[0]
    fe_out = jax.block_until_ready(feature_extractor(enc_in, params, row_tile=8))
    fe_ref = _fe_reference(enc_in, params)
    assert jnp.allclose(fe_out, fe_ref, rtol=1e-3, atol=1e-4), (fe_out, fe_ref)

    # --- Interpolator multi-tile / padding / online-accumulation path ---------------
    nc2, nt2 = 300, 24
    zc2 = jax.random.normal(keys[9], (nc2, z_dim), jnp.float32)
    yc2 = jax.random.normal(keys[10], (nc2, y_dim), jnp.float32)
    zt2 = jax.random.normal(keys[11], (nt2, z_dim), jnp.float32)
    W2 = jnp.eye(z_dim, dtype=jnp.float32) + \
        0.05 * jax.random.normal(keys[12], (z_dim, z_dim), jnp.float32)
    out2 = jax.block_until_ready(interpolate(zc2, yc2, zt2, W2, tile_t=8, tile_c=128))
    ref2 = _interp_reference(zc2, yc2, zt2, W2)
    assert out2.shape == (nt2, y_dim), out2.shape
    assert jnp.allclose(out2, ref2, rtol=2e-2, atol=2e-2), (out2, ref2)

    print("KERNEL_OK")
</pallas_src>

<mosaic_0001>
module attributes {stable_mosaic.version = 11 : i64} {
  func.func @_fe_kernel(%arg0: i32, %arg1: memref<24x8xf32, #tpu.memory_space<vmem>>, %arg2: memref<8x32xf32, #tpu.memory_space<vmem>>, %arg3: memref<1x32xf32, #tpu.memory_space<vmem>>, %arg4: memref<32x16xf32, #tpu.memory_space<vmem>>, %arg5: memref<1x16xf32, #tpu.memory_space<vmem>>, %arg6: memref<16x8xf32, #tpu.memory_space<vmem>>, %arg7: memref<1x8xf32, #tpu.memory_space<vmem>>, %arg8: memref<24x8xf32, #tpu.memory_space<vmem>>) attributes {dimension_semantics = [#tpu.dimension_semantics<parallel>], iteration_bounds = array<i64: 1>, scalar_prefetch = 0 : i64, scratch_operands = 0 : i64, tpu.core_type = #tpu.core_type<tc>, window_params = [{transform_indices = @transform_0, window_bounds = array<i64: 24, 8>}, {pipeline_mode = #tpu.pipeline_mode<synchronous>, transform_indices = @transform_1, window_bounds = array<i64: 8, 32>}, {pipeline_mode = #tpu.pipeline_mode<synchronous>, transform_indices = @transform_2, window_bounds = array<i64: 1, 32>}, {pipeline_mode = #tpu.pipeline_mode<synchronous>, transform_indices = @transform_3, window_bounds = array<i64: 32, 16>}, {pipeline_mode = #tpu.pipeline_mode<synchronous>, transform_indices = @transform_4, window_bounds = array<i64: 1, 16>}, {pipeline_mode = #tpu.pipeline_mode<synchronous>, transform_indices = @transform_5, window_bounds = array<i64: 16, 8>}, {pipeline_mode = #tpu.pipeline_mode<synchronous>, transform_indices = @transform_6, window_bounds = array<i64: 1, 8>}, {transform_indices = @transform_7, window_bounds = array<i64: 24, 8>}]} {
    %c0 = arith.constant 0 : index
    %c0_0 = arith.constant 0 : index
    %0 = vector.load %arg1[%c0, %c0_0] : memref<24x8xf32, #tpu.memory_space<vmem>>, vector<24x8xf32>
    %c0_1 = arith.constant 0 : index
    %c0_2 = arith.constant 0 : index
    %1 = vector.load %arg2[%c0_1, %c0_2] : memref<8x32xf32, #tpu.memory_space<vmem>>, vector<8x32xf32>
    %cst = arith.constant dense<0.000000e+00> : vector<24x32xf32>
    %2 = tpu.matmul %0, %1, %cst {dimension_numbers = #tpu.dot_dimension_numbers<[1], [0], [0], [1], [0, 0, 1, 1], [], []>} : vector<24x8xf32>, vector<8x32xf32>, vector<24x32xf32> -> vector<24x32xf32>
    %c0_3 = arith.constant 0 : index
    %c0_4 = arith.constant 0 : index
    %3 = vector.load %arg3[%c0_3, %c0_4] : memref<1x32xf32, #tpu.memory_space<vmem>>, vector<1x32xf32>
    %4 = vector.broadcast %3 : vector<1x32xf32> to vector<24x32xf32>
    %5 = arith.addf %2, %4 : vector<24x32xf32>
    %cst_5 = arith.constant 0.000000e+00 : f32
    %6 = vector.broadcast %cst_5 : f32 to vector<24x32xf32>
    %7 = arith.maximumf %5, %6 : vector<24x32xf32>
    %c0_6 = arith.constant 0 : index
    %c0_7 = arith.constant 0 : index
    %8 = vector.load %arg4[%c0_6, %c0_7] : memref<32x16xf32, #tpu.memory_space<vmem>>, vector<32x16xf32>
    %cst_8 = arith.constant dense<0.000000e+00> : vector<24x16xf32>
    %9 = tpu.matmul %7, %8, %cst_8 {dimension_numbers = #tpu.dot_dimension_numbers<[1], [0], [0], [1], [0, 0, 1, 1], [], []>} : vector<24x32xf32>, vector<32x16xf32>, vector<24x16xf32> -> vector<24x16xf32>
    %c0_9 = arith.constant 0 : index
    %c0_10 = arith.constant 0 : index
    %10 = vector.load %arg5[%c0_9, %c0_10] : memref<1x16xf32, #tpu.memory_space<vmem>>, vector<1x16xf32>
    %11 = vector.broadcast %10 : vector<1x16xf32> to vector<24x16xf32>
    %12 = arith.addf %9, %11 : vector<24x16xf32>
    %cst_11 = arith.constant 0.000000e+00 : f32
    %13 = vector.broadcast %cst_11 : f32 to vector<24x16xf32>
    %14 = arith.maximumf %12, %13 : vector<24x16xf32>
    %c0_12 = arith.constant 0 : index
    %c0_13 = arith.constant 0 : index
    %15 = vector.load %arg6[%c0_12, %c0_13] : memref<16x8xf32, #tpu.memory_space<vmem>>, vector<16x8xf32>
    %cst_14 = arith.constant dense<0.000000e+00> : vector<24x8xf32>
    %16 = tpu.matmul %14, %15, %cst_14 {dimension_numbers = #tpu.dot_dimension_numbers<[1], [0], [0], [1], [0, 0, 1, 1], [], []>} : vector<24x16xf32>, vector<16x8xf32>, vector<24x8xf32> -> vector<24x8xf32>
    %c0_15 = arith.constant 0 : index
    %c0_16 = arith.constant 0 : index
    %17 = vector.load %arg7[%c0_15, %c0_16] : memref<1x8xf32, #tpu.memory_space<vmem>>, vector<1x8xf32>
    %18 = vector.broadcast %17 : vector<1x8xf32> to vector<24x8xf32>
    %19 = arith.addf %16, %18 : vector<24x8xf32>
    %c0_17 = arith.constant 0 : index
    %c0_18 = arith.constant 0 : index
    %20 = vector.load %arg8[%c0_17, %c0_18] : memref<24x8xf32, #tpu.memory_space<vmem>>, vector<24x8xf32>
    tpu.vector_store %arg8[%c0_17, %c0_18], %19 {strides = array<i32>} : memref<24x8xf32, #tpu.memory_space<vmem>>, vector<24x8xf32>,
    return
  }
  func.func @transform_0(%arg0: i32) -> (i32, i32) {
    %c0_i32 = arith.constant 0 : i32
    %c0_i32_0 = arith.constant 0 : i32
    return %arg0, %c0_i32 : i32, i32
  }
  func.func @transform_1(%arg0: i32) -> (i32, i32) {
    %c0_i32 = arith.constant 0 : i32
    %c0_i32_0 = arith.constant 0 : i32
    %c0_i32_1 = arith.constant 0 : i32
    return %c0_i32, %c0_i32_0 : i32, i32
  }
  func.func @transform_2(%arg0: i32) -> (i32, i32) {
    %c0_i32 = arith.constant 0 : i32
    %c0_i32_0 = arith.constant 0 : i32
    %c0_i32_1 = arith.constant 0 : i32
    return %c0_i32, %c0_i32_0 : i32, i32
  }
  func.func @transform_3(%arg0: i32) -> (i32, i32) {
    %c0_i32 = arith.constant 0 : i32
    %c0_i32_0 = arith.constant 0 : i32
    %c0_i32_1 = arith.constant 0 : i32
    return %c0_i32, %c0_i32_0 : i32, i32
  }
  func.func @transform_4(%arg0: i32) -> (i32, i32) {
    %c0_i32 = arith.constant 0 : i32
    %c0_i32_0 = arith.constant 0 : i32
    %c0_i32_1 = arith.constant 0 : i32
    return %c0_i32, %c0_i32_0 : i32, i32
  }
  func.func @transform_5(%arg0: i32) -> (i32, i32) {
    %c0_i32 = arith.constant 0 : i32
    %c0_i32_0 = arith.constant 0 : i32
    %c0_i32_1 = arith.constant 0 : i32
    return %c0_i32, %c0_i32_0 : i32, i32
  }
  func.func @transform_6(%arg0: i32) -> (i32, i32) {
    %c0_i32 = arith.constant 0 : i32
    %c0_i32_0 = arith.constant 0 : i32
    %c0_i32_1 = arith.constant 0 : i32
    return %c0_i32, %c0_i32_0 : i32, i32
  }
  func.func @transform_7(%arg0: i32) -> (i32, i32) {
    %c0_i32 = arith.constant 0 : i32
    %c0_i32_0 = arith.constant 0 : i32
    return %arg0, %c0_i32 : i32, i32
  }
}

</mosaic_0001>

<llo_original>
// kernel: tpu_custom_call.1
$region0: #{tpu_custom_call.1}
  #allocation0 [shape = 'u32[]', space=smem, size = 0x4, offset = 0x4, fixed_abs, tag = 'smem constant byte address 0x4 - core index']
  #allocation1 [shape = 'u32[144,128]{1,0:T(1,128)}', space=vmem, size = 0x12000, scoped, tag = 'internal scratch']
  %s0 = inlined_call_operand.hbm [shape: f32[24,8], index: 0, kind: input, shape index: {}]
  %s1 = inlined_call_operand.hbm [shape: f32[8,32], index: 1, kind: input, shape index: {}]
  %s2 = inlined_call_operand.hbm [shape: f32[1,32], index: 2, kind: input, shape index: {}]
  %s3 = inlined_call_operand.hbm [shape: f32[32,16], index: 3, kind: input, shape index: {}]
  %s4 = inlined_call_operand.hbm [shape: f32[1,16], index: 4, kind: input, shape index: {}]
  %s5 = inlined_call_operand.hbm [shape: f32[16,8], index: 5, kind: input, shape index: {}]
  %s6 = inlined_call_operand.hbm [shape: f32[1,8], index: 6, kind: input, shape index: {}]
  %s7 = inlined_call_operand.hbm [shape: f32[24,8], index: 7, kind: output, shape index: {}]
  %s8 = sld [smem:[#allocation0]]
  $region66: #{tpu_custom_call.1} parent=0
    _
  %s10 = ssub.s32 1, %s8
  %s11 = scalar_select 0, %s10, %s8
  $region1: #{tpu_custom_call.1} parent=0
    #allocation2 [shape = 'u8[12288]{0}', space=vmem, size = 0x3000, scoped, tag = 'input window, operand 0, single buffered']
    #allocation3 [shape = 's32[1]{0}', space=sflag, size = 0x4, scoped, tag = 'scoped memory for tpu_custom_call.1']
    #allocation4 [shape = 's32[1]{0}', space=sflag, size = 0x4, scoped, tag = 'scoped memory for tpu_custom_call.1']
    #allocation5 [shape = 'u8[4096]{0}', space=vmem, size = 0x1000, scoped, tag = 'input window, operand 1, single buffered']
    #allocation6 [shape = 's32[1]{0}', space=sflag, size = 0x4, scoped, tag = 'scoped memory for tpu_custom_call.1']
    #allocation7 [shape = 'u8[512]{0}', space=vmem, size = 0x400, scoped, tag = 'input window, operand 2, single buffered']
    #allocation8 [shape = 'u8[16384]{0}', space=vmem, size = 0x4000, scoped, tag = 'input window, operand 3, single buffered']
    #allocation9 [shape = 's32[1]{0}', space=sflag, size = 0x4, scoped, tag = 'scoped memory for tpu_custom_call.1']
    #allocation10 [shape = 'u8[512]{0}', space=vmem, size = 0x400, scoped, tag = 'input window, operand 4, single buffered']
    #allocation11 [shape = 'u8[8192]{0}', space=vmem, size = 0x2000, scoped, tag = 'input window, operand 5, single buffered']
    #allocation12 [shape = 's32[1]{0}', space=sflag, size = 0x4, scoped, tag = 'scoped memory for tpu_custom_call.1']
    #allocation13 [shape = 'u8[512]{0}', space=vmem, size = 0x400, scoped, tag = 'input window, operand 6, single buffered']
    #allocation14 [shape = 'u8[12288]{0}', space=vmem, size = 0x3000, scoped, tag = 'output window, operand 0, single buffered']
    %12 = vsyncpa [#allocation3], 0
    %13 = vsyncpa [#allocation6], 0
    %14 = vsyncpa [#allocation9], 0
    %15 = vsyncpa [#allocation12], 0
    %16 = vsyncpa [#allocation4], 0
    // Predicated region
    $region2: #{tpu_custom_call.1} parent=1 // pred_check
      _
    $region3: #{tpu_custom_call.1} parent=1 // pred_check_branch
      %18 = sbr.rel (0) target = $region5
    $region4: #{tpu_custom_call.1} parent=1 // pred_region
      %s20 = ssub.s32 384, 384
      %21 = vsyncadd [#allocation3], %s20
      %s22 = sshll.u32 [#allocation2], 4
      %s23 = int_to_ptr.vmem [resolvable:$true] %s22
      %28 = dma.hbm_to_vmem [thread:$0]  %s0, 384, %s23, [#allocation3], 128, 128, 8
    $region5: #{tpu_custom_call.1} parent=1 // pred_fallthru
      _
    // Predicated region
    $region6: #{tpu_custom_call.1} parent=1 // pred_check
      _
    $region7: #{tpu_custom_call.1} parent=1 // pred_check_branch
      %30 = sbr.rel (0) target = $region9
    $region8: #{tpu_custom_call.1} parent=1 // pred_region
      %s32 = ssub.s32 128, 128
      %33 = vsyncadd [#allocation6], %s32
      %s35 = sshll.u32 [#allocation5], 4
      %s36 = int_to_ptr.vmem [resolvable:$true] %s35
      %38 = dma.hbm_to_vmem [thread:$0]  %s1, 128, %s36, [#allocation6]
    $region9: #{tpu_custom_call.1} parent=1 // pred_fallthru
      _
    // Predicated region
    $region10: #{tpu_custom_call.1} parent=1 // pred_check
      _
    $region11: #{tpu_custom_call.1} parent=1 // pred_check_branch
      %40 = sbr.rel (0) target = $region13
    $region12: #{tpu_custom_call.1} parent=1 // pred_region
      %s42 = ssub.s32 16, 16
      %43 = vsyncadd [#allocation6], %s42
      %s45 = sshll.u32 [#allocation7], 4
      %s46 = int_to_ptr.vmem [resolvable:$true] %s45
      %48 = dma.hbm_to_vmem [thread:$0]  %s2, 16, %s46, [#allocation6]
    $region13: #{tpu_custom_call.1} parent=1 // pred_fallthru
      _
    // Predicated region
    $region14: #{tpu_custom_call.1} parent=1 // pred_check
      _
    $region15: #{tpu_custom_call.1} parent=1 // pred_check_branch
      %50 = sbr.rel (0) target = $region17
    $region16: #{tpu_custom_call.1} parent=1 // pred_region
      %s52 = ssub.s32 512, 512
      %53 = vsyncadd [#allocation9], %s52
      %s54 = sshll.u32 [#allocation8], 4
      %s55 = int_to_ptr.vmem [resolvable:$true] %s54
      %60 = dma.hbm_to_vmem [thread:$0]  %s3, 512, %s55, [#allocation9], 128, 128, 8
    $region17: #{tpu_custom_call.1} parent=1 // pred_fallthru
      _
    // Predicated region
    $region18: #{tpu_custom_call.1} parent=1 // pred_check
      _
    $region19: #{tpu_custom_call.1} parent=1 // pred_check_branch
      %62 = sbr.rel (0) target = $region21
    $region20: #{tpu_custom_call.1} parent=1 // pred_region
      %s64 = ssub.s32 16, 16
      %65 = vsyncadd [#allocation9], %s64
      %s67 = sshll.u32 [#allocation10], 4
      %s68 = int_to_ptr.vmem [resolvable:$true] %s67
      %70 = dma.hbm_to_vmem [thread:$0]  %s4, 16, %s68, [#allocation9]
    $region21: #{tpu_custom_call.1} parent=1 // pred_fallthru
      _
    // Predicated region
    $region22: #{tpu_custom_call.1} parent=1 // pred_check
      _
    $region23: #{tpu_custom_call.1} parent=1 // pred_check_branch
      %72 = sbr.rel (0) target = $region25
    $region24: #{tpu_custom_call.1} parent=1 // pred_region
      %s74 = ssub.s32 256, 256
      %75 = vsyncadd [#allocation12], %s74
      %s76 = sshll.u32 [#allocation11], 4
      %s77 = int_to_ptr.vmem [resolvable:$true] %s76
      %82 = dma.hbm_to_vmem [thread:$0]  %s5, 256, %s77, [#allocation12], 128, 128, 8
    $region25: #{tpu_custom_call.1} parent=1 // pred_fallthru
      _
    // Predicated region
    $region26: #{tpu_custom_call.1} parent=1 // pred_check
      _
    $region27: #{tpu_custom_call.1} parent=1 // pred_check_branch
      %84 = sbr.rel (0) target = $region29
    $region28: #{tpu_custom_call.1} parent=1 // pred_region
      %s86 = ssub.s32 16, 16
      %87 = vsyncadd [#allocation12], %s86
      %s89 = sshll.u32 [#allocation13], 4
      %s90 = int_to_ptr.vmem [resolvable:$true] %s89
      %92 = dma.hbm_to_vmem [thread:$0]  %s6, 16, %s90, [#allocation12]
    $region29: #{tpu_custom_call.1} parent=1 // pred_fallthru
      _
    // Predicated region
    $region30: #{tpu_custom_call.1} parent=1 // pred_check
      _
    $region31: #{tpu_custom_call.1} parent=1 // pred_check_branch
      %94 = sbr.rel (0) target = $region33
    $region32: #{tpu_custom_call.1} parent=1 // pred_region
      %95 = dma.done [#allocation3], 384
    $region33: #{tpu_custom_call.1} parent=1 // pred_fallthru
      _
    // Predicated region
    $region34: #{tpu_custom_call.1} parent=1 // pred_check
      _
    $region35: #{tpu_custom_call.1} parent=1 // pred_check_branch
      %97 = sbr.rel (0) target = $region37
    $region36: #{tpu_custom_call.1} parent=1 // pred_region
      %98 = dma.done [#allocation6], 128
    $region37: #{tpu_custom_call.1} parent=1 // pred_fallthru
      _
    // Predicated region
    $region38: #{tpu_custom_call.1} parent=1 // pred_check
      _
    $region39: #{tpu_custom_call.1} parent=1 // pred_check_branch
      %100 = sbr.rel (0) target = $region41
    $region40: #{tpu_custom_call.1} parent=1 // pred_region
      %101 = dma.done [#allocation6], 16
    $region41: #{tpu_custom_call.1} parent=1 // pred_fallthru
      _
    // Predicated region
    $region42: #{tpu_custom_call.1} parent=1 // pred_check
      _
    $region43: #{tpu_custom_call.1} parent=1 // pred_check_branch
      %103 = sbr.rel (0) target = $region45
    $region44: #{tpu_custom_call.1} parent=1 // pred_region
      %104 = dma.done [#allocation9], 512
    $region45: #{tpu_custom_call.1} parent=1 // pred_fallthru
      _
    // Predicated region
    $region46: #{tpu_custom_call.1} parent=1 // pred_check
      _
    $region47: #{tpu_custom_call.1} parent=1 // pred_check_branch
      %106 = sbr.rel (0) target = $region49
    $region48: #{tpu_custom_call.1} parent=1 // pred_region
      %107 = dma.done [#allocation9], 16
    $region49: #{tpu_custom_call.1} parent=1 // pred_fallthru
      _
    // Predicated region
    $region50: #{tpu_custom_call.1} parent=1 // pred_check
      _
    $region51: #{tpu_custom_call.1} parent=1 // pred_check_branch
      %109 = sbr.rel (0) target = $region53
    $region52: #{tpu_custom_call.1} parent=1 // pred_region
      %110 = dma.done [#allocation12], 256
    $region53: #{tpu_custom_call.1} parent=1 // pred_fallthru
      _
    // Predicated region
    $region54: #{tpu_custom_call.1} parent=1 // pred_check
      _
    $region55: #{tpu_custom_call.1} parent=1 // pred_check_branch
      %112 = sbr.rel (0) target = $region57
    $region56: #{tpu_custom_call.1} parent=1 // pred_region
      %113 = dma.done [#allocation12], 16
    $region57: #{tpu_custom_call.1} parent=1 // pred_fallthru
      _
    %v114 = vld [vmem:[#allocation2] sm:$0xff]
    %v115 = vld [vmem:[#allocation2 + $0x8] sm:$0xff]
    %v116 = vld [vmem:[#allocation2 + $0x10] sm:$0xff]
    %v117 = vld [vmem:[#allocation5] sm:$0xff]
    %v118 = vld [vmem:[#allocation7] sm:$0x1]
    %v120 = vlaneseq
    %v121 = vshrl.u32 %v120, 7
    %v122 = vsub.s32 0, %v121
    %v123 = vrot.slane %v118, %v122
    %vm125 = vcmask 64512
    %v127 = vsel %vm125, %v114, 0
    %v130 = vsel %vm125, %v115, 0
    %v133 = vsel %vm125, %v116, 0
    %135 = vmatprep.subr.mxu0 0.0
    %136 = vmatpush1.msra.mxu0 %v117
    %137 = vmatprep.subr.mxu0 0.0
    %138 = vmatpush1.msra.mxu0 0.0
    %139 = vmatprep.subr.mxu0 0.0
    %140 = vmatpush1.msra.mxu0 0.0
    %141 = vmatprep.subr.mxu0 0.0
    %142 = vmatpush1.msra.mxu0 0.0
    %143 = vmatprep.subr.mxu0 0.0
    %144 = vmatpush1.msra.mxu0 0.0
    %145 = vmatprep.subr.mxu0 0.0
    %146 = vmatpush1.msra.mxu0 0.0
    %147 = vmatprep.subr.mxu0 0.0
    %148 = vmatpush1.msra.mxu0 0.0
    %149 = vmatprep.subr.mxu0 0.0
    %150 = vmatpush1.msra.mxu0 0.0
    %151 = vmatprep.subr.mxu0 0.0
    %152 = vmatpush1.msra.mxu0 0.0
    %153 = vmatprep.subr.mxu0 0.0
    %154 = vmatpush1.msra.mxu0 0.0
    %155 = vmatprep.subr.mxu0 0.0
    %156 = vmatpush1.msra.mxu0 0.0
    %157 = vmatprep.subr.mxu0 0.0
    %158 = vmatpush1.msra.mxu0 0.0
    %159 = vmatprep.subr.mxu0 0.0
    %160 = vmatpush1.msra.mxu0 0.0
    %161 = vmatprep.subr.mxu0 0.0
    %162 = vmatpush1.msra.mxu0 0.0
    %163 = vmatprep.subr.mxu0 0.0
    %164 = vmatpush1.msra.mxu0 0.0
    %165 = vmatprep.subr.mxu0 0.0
    %166 = vmatpush1.msra.mxu0 0.0
    %167 = vmatprep.subr.mxu0 0.0
    %168 = vmatpush1.msra.mxu0 0.0
    %169 = vmatprep.subr.mxu0 0.0
    %170 = vmatpush1.msra.mxu0 0.0
    %171 = vmatprep.subr.mxu0 0.0
    %172 = vmatpush1.msra.mxu0 0.0
    %173 = vmatprep.subr.mxu0 0.0
    %174 = vmatpush1.msra.mxu0 0.0
    %175 = vmatprep.subr.mxu0 0.0
    %176 = vmatpush1.msra.mxu0 0.0
    %177 = vmatprep.subr.mxu0 0.0
    %178 = vmatpush1.msra.mxu0 0.0
    %179 = vmatprep.subr.mxu0 0.0
    %180 = vmatpush1.msra.mxu0 0.0
    %181 = vmatprep.subr.mxu0 0.0
    %182 = vmatpush1.msra.mxu0 0.0
    %183 = vmatprep.subr.mxu0 0.0
    %184 = vmatpush1.msra.mxu0 0.0
    %185 = vmatprep.subr.mxu0 0.0
    %186 = vmatpush1.msra.mxu0 0.0
    %187 = vmatprep.subr.mxu0 0.0
    %188 = vmatpush1.msra.mxu0 0.0
    %189 = vmatprep.subr.mxu0 0.0
    %190 = vmatpush1.msra.mxu0 0.0
    %191 = vmatprep.subr.mxu0 0.0
    %192 = vmatpush1.msra.mxu0 0.0
    %193 = vmatprep.subr.mxu0 0.0
    %194 = vmatpush1.msra.mxu0 0.0
    %195 = vmatprep.subr.mxu0 0.0
    %196 = vmatpush1.msra.mxu0 0.0
    %197 = vmatprep.subr.mxu0 0.0
    %198 = vmatpush1.msra.mxu0 0.0
    %199 = vmatprep.mubr.f32.mxu0 0.0
    %200 = vmatmul.mubr.f32.gmra.mrb[0].mxu0 %v127
    %v201 = vpop.f32.mrb[0].mxu0
    %v202 = vadd.f32 %v123, %v201
    %v203 = vpop.f32.mrb[0].mxu0
    %204 = vmatprep.mubr.f32.mxu0 0.0
    %205 = vmatmul.mubr.f32.gmra.mrb[0].mxu0 %v130
    %v206 = vpop.f32.mrb[0].mxu0
    %v207 = vadd.f32 %v123, %v206
    %v208 = vpop.f32.mrb[0].mxu0
    %209 = vmatprep.mubr.f32.mxu0 0.0
    %210 = vmatmul.mubr.f32.gmra.mrb[0].mxu0 %v133
    %v211 = vpop.f32.mrb[0].mxu0
    %v212 = vadd.f32 %v123, %v211
    %v213 = vpop.f32.mrb[0].mxu0
    %214 = vdwg.mxu0
    %v215 = vmax.f32 %v202, 0.0
    %v216 = vmax.f32 %v207, 0.0
    %v217 = vmax.f32 %v212, 0.0
    %v218 = vld [vmem:[#allocation8] sm:$0xff]
    %v219 = vld [vmem:[#allocation8 + $0x8] sm:$0xff]
    %v220 = vld [vmem:[#allocation8 + $0x10] sm:$0xff]
    %v221 = vld [vmem:[#allocation8 + $0x18] sm:$0xff]
    %v222 = vld [vmem:[#allocation10] sm:$0x1]
    %v224 = vlaneseq
    %v225 = vshrl.u32 %v224, 7
    %v226 = vsub.s32 0, %v225
    %v227 = vrot.slane %v222, %v226
    %vm229 = vcmask 261120
    %v231 = vsel %vm229, %v215, 0
    %v234 = vsel %vm229, %v216, 0
    %v237 = vsel %vm229, %v217, 0
    %239 = vmatprep.subr.mxu0 0.0
    %240 = vmatpush1.msra.mxu0 %v218
    %241 = vmatprep.subr.mxu0 0.0
    %242 = vmatpush1.msra.mxu0 %v219
    %243 = vmatprep.subr.mxu0 0.0
    %244 = vmatpush1.msra.mxu0 %v220
    %245 = vmatprep.subr.mxu0 0.0
    %246 = vmatpush1.msra.mxu0 %v221
    %247 = vmatprep.subr.mxu0 0.0
    %248 = vmatpush1.msra.mxu0 0.0
    %249 = vmatprep.subr.mxu0 0.0
    %250 = vmatpush1.msra.mxu0 0.0
    %251 = vmatprep.subr.mxu0 0.0
    %252 = vmatpush1.msra.mxu0 0.0
    %253 = vmatprep.subr.mxu0 0.0
    %254 = vmatpush1.msra.mxu0 0.0
    %255 = vmatprep.subr.mxu0 0.0
    %256 = vmatpush1.msra.mxu0 0.0
    %257 = vmatprep.subr.mxu0 0.0
    %258 = vmatpush1.msra.mxu0 0.0
    %259 = vmatprep.subr.mxu0 0.0
    %260 = vmatpush1.msra.mxu0 0.0
    %261 = vmatprep.subr.mxu0 0.0
    %262 = vmatpush1.msra.mxu0 0.0
    %263 = vmatprep.subr.mxu0 0.0
    %264 = vmatpush1.msra.mxu0 0.0
    %265 = vmatprep.subr.mxu0 0.0
    %266 = vmatpush1.msra.mxu0 0.0
    %267 = vmatprep.subr.mxu0 0.0
    %268 = vmatpush1.msra.mxu0 0.0
    %269 = vmatprep.subr.mxu0 0.0
    %270 = vmatpush1.msra.mxu0 0.0
    %271 = vmatprep.subr.mxu0 0.0
    %272 = vmatpush1.msra.mxu0 0.0
    %273 = vmatprep.subr.mxu0 0.0
    %274 = vmatpush1.msra.mxu0 0.0
    %275 = vmatprep.subr.mxu0 0.0
    %276 = vmatpush1.msra.mxu0 0.0
    %277 = vmatprep.subr.mxu0 0.0
    %278 = vmatpush1.msra.mxu0 0.0
    %279 = vmatprep.subr.mxu0 0.0
    %280 = vmatpush1.msra.mxu0 0.0
    %281 = vmatprep.subr.mxu0 0.0
    %282 = vmatpush1.msra.mxu0 0.0
    %283 = vmatprep.subr.mxu0 0.0
    %284 = vmatpush1.msra.mxu0 0.0
    %285 = vmatprep.subr.mxu0 0.0
    %286 = vmatpush1.msra.mxu0 0.0
    %287 = vmatprep.subr.mxu0 0.0
    %288 = vmatpush1.msra.mxu0 0.0
    %289 = vmatprep.subr.mxu0 0.0
    %290 = vmatpush1.msra.mxu0 0.0
    %291 = vmatprep.subr.mxu0 0.0
    %292 = vmatpush1.msra.mxu0 0.0
    %293 = vmatprep.subr.mxu0 0.0
    %294 = vmatpush1.msra.mxu0 0.0
    %295 = vmatprep.subr.mxu0 0.0
    %296 = vmatpush1.msra.mxu0 0.0
    %297 = vmatprep.subr.mxu0 0.0
    %298 = vmatpush1.msra.mxu0 0.0
    %299 = vmatprep.subr.mxu0 0.0
    %300 = vmatpush1.msra.mxu0 0.0
    %301 = vmatprep.subr.mxu0 0.0
    %302 = vmatpush1.msra.mxu0 0.0
    %303 = vmatprep.mubr.f32.mxu0 0.0
    %304 = vmatmul.mubr.f32.gmra.mrb[0].mxu0 %v231
    %v305 = vpop.f32.mrb[0].mxu0
    %v306 = vadd.f32 %v227, %v305
    %v307 = vpop.f32.mrb[0].mxu0
    %308 = vmatprep.mubr.f32.mxu0 0.0
    %309 = vmatmul.mubr.f32.gmra.mrb[0].mxu0 %v234
    %v310 = vpop.f32.mrb[0].mxu0
    %v311 = vadd.f32 %v227, %v310
    %v312 = vpop.f32.mrb[0].mxu0
    %313 = vmatprep.mubr.f32.mxu0 0.0
    %314 = vmatmul.mubr.f32.gmra.mrb[0].mxu0 %v237
    %v315 = vpop.f32.mrb[0].mxu0
    %v316 = vadd.f32 %v227, %v315
    %v317 = vpop.f32.mrb[0].mxu0
    %318 = vdwg.mxu0
    %v319 = vmax.f32 %v306, 0.0
    %v320 = vmax.f32 %v311, 0.0
    %v321 = vmax.f32 %v316, 0.0
    %v322 = vld [vmem:[#allocation11] sm:$0xff]
    %v323 = vld [vmem:[#allocation11 + $0x8] sm:$0xff]
    %v324 = vld [vmem:[#allocation13] sm:$0x1]
    %v326 = vlaneseq
    %v327 = vshrl.u32 %v326, 7
    %v328 = vsub.s32 0, %v327
    %v329 = vrot.slane %v324, %v328
    %vm331 = vcmask 130048
    %v333 = vsel %vm331, %v319, 0
    %v336 = vsel %vm331, %v320, 0
    %v339 = vsel %vm331, %v321, 0
    %341 = vmatprep.subr.mxu0 0.0
    %342 = vmatpush1.msra.mxu0 %v322
    %343 = vmatprep.subr.mxu0 0.0
    %344 = vmatpush1.msra.mxu0 %v323
    %345 = vmatprep.subr.mxu0 0.0
    %346 = vmatpush1.msra.mxu0 0.0
    %347 = vmatprep.subr.mxu0 0.0
    %348 = vmatpush1.msra.mxu0 0.0
    %349 = vmatprep.subr.mxu0 0.0
    %350 = vmatpush1.msra.mxu0 0.0
    %351 = vmatprep.subr.mxu0 0.0
    %352 = vmatpush1.msra.mxu0 0.0
    %353 = vmatprep.subr.mxu0 0.0
    %354 = vmatpush1.msra.mxu0 0.0
    %355 = vmatprep.subr.mxu0 0.0
    %356 = vmatpush1.msra.mxu0 0.0
    %357 = vmatprep.subr.mxu0 0.0
    %358 = vmatpush1.msra.mxu0 0.0
    %359 = vmatprep.subr.mxu0 0.0
    %360 = vmatpush1.msra.mxu0 0.0
    %361 = vmatprep.subr.mxu0 0.0
    %362 = vmatpush1.msra.mxu0 0.0
    %363 = vmatprep.subr.mxu0 0.0
    %364 = vmatpush1.msra.mxu0 0.0
    %365 = vmatprep.subr.mxu0 0.0
    %366 = vmatpush1.msra.mxu0 0.0
    %367 = vmatprep.subr.mxu0 0.0
    %368 = vmatpush1.msra.mxu0 0.0
    %369 = vmatprep.subr.mxu0 0.0
    %370 = vmatpush1.msra.mxu0 0.0
    %371 = vmatprep.subr.mxu0 0.0
    %372 = vmatpush1.msra.mxu0 0.0
    %373 = vmatprep.subr.mxu0 0.0
    %374 = vmatpush1.msra.mxu0 0.0
    %375 = vmatprep.subr.mxu0 0.0
    %376 = vmatpush1.msra.mxu0 0.0
    %377 = vmatprep.subr.mxu0 0.0
    %378 = vmatpush1.msra.mxu0 0.0
    %379 = vmatprep.subr.mxu0 0.0
    %380 = vmatpush1.msra.mxu0 0.0
    %381 = vmatprep.subr.mxu0 0.0
    %382 = vmatpush1.msra.mxu0 0.0
    %383 = vmatprep.subr.mxu0 0.0
    %384 = vmatpush1.msra.mxu0 0.0
    %385 = vmatprep.subr.mxu0 0.0
    %386 = vmatpush1.msra.mxu0 0.0
    %387 = vmatprep.subr.mxu0 0.0
    %388 = vmatpush1.msra.mxu0 0.0
    %389 = vmatprep.subr.mxu0 0.0
    %390 = vmatpush1.msra.mxu0 0.0
    %391 = vmatprep.subr.mxu0 0.0
    %392 = vmatpush1.msra.mxu0 0.0
    %393 = vmatprep.subr.mxu0 0.0
    %394 = vmatpush1.msra.mxu0 0.0
    %395 = vmatprep.subr.mxu0 0.0
    %396 = vmatpush1.msra.mxu0 0.0
    %397 = vmatprep.subr.mxu0 0.0
    %398 = vmatpush1.msra.mxu0 0.0
    %399 = vmatprep.subr.mxu0 0.0
    %400 = vmatpush1.msra.mxu0 0.0
    %401 = vmatprep.subr.mxu0 0.0
    %402 = vmatpush1.msra.mxu0 0.0
    %403 = vmatprep.subr.mxu0 0.0
    %404 = vmatpush1.msra.mxu0 0.0
    %405 = vmatprep.mubr.f32.mxu0 0.0
    %406 = vmatmul.mubr.f32.gmra.mrb[0].mxu0 %v333
    %v407 = vpop.f32.mrb[0].mxu0
    %v408 = vadd.f32 %v329, %v407
    %v409 = vpop.f32.mrb[0].mxu0
    %410 = vmatprep.mubr.f32.mxu0 0.0
    %411 = vmatmul.mubr.f32.gmra.mrb[0].mxu0 %v336
    %v412 = vpop.f32.mrb[0].mxu0
    %v413 = vadd.f32 %v329, %v412
    %v414 = vpop.f32.mrb[0].mxu0
    %415 = vmatprep.mubr.f32.mxu0 0.0
    %416 = vmatmul.mubr.f32.gmra.mrb[0].mxu0 %v339
    %v417 = vpop.f32.mrb[0].mxu0
    %v418 = vadd.f32 %v329, %v417
    %v419 = vpop.f32.mrb[0].mxu0
    %420 = vdwg.mxu0
    %421 = vst.msk [vmem:[#allocation14] sm:$0xff] %vm125, %v408
    %422 = vst.msk [vmem:[#allocation14 + $0x8] sm:$0xff] %vm125, %v413
    %423 = vst.msk [vmem:[#allocation14 + $0x10] sm:$0xff] %vm125, %v418
    // Predicated region
    $region58: #{tpu_custom_call.1} parent=1 // pred_check
      _
    $region59: #{tpu_custom_call.1} parent=1 // pred_check_branch
      %425 = sbr.rel (0) target = $region61
    $region60: #{tpu_custom_call.1} parent=1 // pred_region
      %s427 = ssub.s32 384, 384
      %428 = vsyncadd [#allocation4], %s427
      %s429 = sshll.u32 [#allocation14], 4
      %s430 = int_to_ptr.vmem [resolvable:$true] %s429
      %435 = dma.vmem_to_hbm [thread:$0]  %s430, 384, %s7, [#allocation4], 128, 128, 8
    $region61: #{tpu_custom_call.1} parent=1 // pred_fallthru
      _
    // Predicated region
    $region62: #{tpu_custom_call.1} parent=1 // pred_check
      _
    $region63: #{tpu_custom_call.1} parent=1 // pred_check_branch
      %437 = sbr.rel (0) target = $region65
    $region64: #{tpu_custom_call.1} parent=1 // pred_region
      %438 = dma.done [#allocation4], 384
    $region65: #{tpu_custom_call.1} parent=1 // pred_fallthru
      _
    %439 = vsyncpa [#allocation3], 1
    %440 = vsyncpa [#allocation6], 1
    %441 = vsyncpa [#allocation9], 1
    %442 = vsyncpa [#allocation12], 1
    %443 = vsyncpa [#allocation4], 1

</llo_original>
